<compile_context>
chip_gen: v5e
topology: v5e:2x2
jax: 0.10.0
libtpu: 0.0.40
codegen_flags: <defaults>
</compile_context>

<pallas_src>
import jax
import jax.numpy as jnp
from jax.experimental import pallas as pl
from jax.experimental.pallas import tpu as pltpu


def _round_up(a, b):
    return ((a + b - 1) // b) * b


def _rgb_converter_kernel(x_ref, w_ref, b_ref, o_ref):
    # x_ref: (rows, K), w_ref: (K, N), b_ref: (1, N), o_ref: (rows, N)
    logits = jnp.dot(x_ref[...], w_ref[...], preferred_element_type=jnp.float32)
    logits = logits + b_ref[...]
    o_ref[...] = (0.9 * jax.nn.sigmoid(logits)).astype(o_ref.dtype)


def rgb_converter_forward(x, w1, b1, *, tm=8192):
    """y = 0.9 * sigmoid(x @ w1.T + b1).  x: (..., F), w1: (3, F), b1: (3,)."""
    orig_shape = x.shape
    F = orig_shape[-1]
    out_dtype = x.dtype

    x2d = x.reshape(-1, F)
    M = x2d.shape[0]

    # Lane-pack `pack` consecutive rows into one 128-lane row when the feature
    # dim divides the 128-lane vreg width (e.g. F=32 -> pack=4).
    pack = (128 // F) if (F <= 128 and 128 % F == 0) else 1

    # Tile size in *original* rows: must be a multiple of 8*pack so the packed
    # view's sublane extent is a multiple of 8 (f32 tiling constraint).
    row_mult = 8 * pack
    tm_rows = min(_round_up(tm, row_mult), _round_up(M, row_mult))
    Mpad = _round_up(M, tm_rows)
    if Mpad != M:
        x2d = jnp.pad(x2d, ((0, Mpad - M), (0, 0)))

    wt = jnp.transpose(w1).astype(jnp.float32)          # (F, 3)
    if pack > 1:
        # Block-diagonal weight: one (rows, 128) @ (128, 3*pack) matmul
        # computes `pack` independent output rows at once.
        wk = jnp.zeros((pack * F, pack * 3), dtype=jnp.float32)
        for r in range(pack):
            wk = wk.at[r * F:(r + 1) * F, r * 3:(r + 1) * 3].set(wt)
        bk = jnp.tile(b1.astype(jnp.float32), pack).reshape(1, pack * 3)
        xk = x2d.reshape(Mpad // pack, pack * F)
    else:
        wk = wt
        bk = b1.astype(jnp.float32).reshape(1, 3)
        xk = x2d

    rows_k = tm_rows // pack            # sublane extent of one tile
    k_dim = pack * F                    # contraction dim (128 when packed)
    n_dim = pack * 3                    # output lane extent
    grid = (Mpad // tm_rows,)

    out = pl.pallas_call(
        _rgb_converter_kernel,
        out_shape=jax.ShapeDtypeStruct((Mpad // pack, n_dim), out_dtype),
        grid_spec=pltpu.PrefetchScalarGridSpec(
            num_scalar_prefetch=0,
            grid=grid,
            in_specs=[
                pl.BlockSpec((rows_k, k_dim), lambda i: (i, 0)),   # x tile (streamed)
                pl.BlockSpec((k_dim, n_dim), lambda i: (0, 0)),    # weight (resident)
                pl.BlockSpec((1, n_dim), lambda i: (0, 0)),        # bias (resident)
            ],
            out_specs=pl.BlockSpec((rows_k, n_dim), lambda i: (i, 0)),
        ),
        compiler_params=pltpu.CompilerParams(
            dimension_semantics=("parallel",),
        ),
    )(xk, wk, bk)

    y = out.reshape(Mpad, 3)[:M]
    return y.reshape(*orig_shape[:-1], 3)


if __name__ == "__main__":
    feature_dim = 32
    B, S = 2, 8  # flattened to M = 16 rows

    key = jax.random.PRNGKey(0)
    kx, kw, kb = jax.random.split(key, 3)

    x = jax.random.normal(kx, (B, S, feature_dim), dtype=jnp.float32)
    # Deterministic "nn.Linear(feature_dim, 3)"-shaped params.
    w1 = jax.random.normal(kw, (3, feature_dim), dtype=jnp.float32) * 0.1
    b1 = jax.random.normal(kb, (3,), dtype=jnp.float32) * 0.1

    y = rgb_converter_forward(x, w1, b1)
    y = jax.block_until_ready(y)

    # Reference check against plain JAX.
    ref = 0.9 * jax.nn.sigmoid(x @ w1.T + b1)
    assert y.shape == (B, S, 3)
    assert jnp.allclose(y, ref, atol=1e-5, rtol=1e-5)

    print("KERNEL_OK")
</pallas_src>

<mosaic_0001>
module attributes {stable_mosaic.version = 11 : i64} {
  func.func @_rgb_converter_kernel(%arg0: i32, %arg1: memref<8x128xf32, #tpu.memory_space<vmem>>, %arg2: memref<128x12xf32, #tpu.memory_space<vmem>>, %arg3: memref<1x12xf32, #tpu.memory_space<vmem>>, %arg4: memref<8x12xf32, #tpu.memory_space<vmem>>) attributes {dimension_semantics = [#tpu.dimension_semantics<parallel>], iteration_bounds = array<i64: 1>, scalar_prefetch = 0 : i64, scratch_operands = 0 : i64, tpu.core_type = #tpu.core_type<tc>, window_params = [{transform_indices = @transform_0, window_bounds = array<i64: 8, 128>}, {pipeline_mode = #tpu.pipeline_mode<synchronous>, transform_indices = @transform_1, window_bounds = array<i64: 128, 12>}, {pipeline_mode = #tpu.pipeline_mode<synchronous>, transform_indices = @transform_2, window_bounds = array<i64: 1, 12>}, {transform_indices = @transform_3, window_bounds = array<i64: 8, 12>}]} {
    %c0 = arith.constant 0 : index
    %c0_0 = arith.constant 0 : index
    %0 = vector.load %arg1[%c0, %c0_0] : memref<8x128xf32, #tpu.memory_space<vmem>>, vector<8x128xf32>
    %c0_1 = arith.constant 0 : index
    %c0_2 = arith.constant 0 : index
    %1 = vector.load %arg2[%c0_1, %c0_2] : memref<128x12xf32, #tpu.memory_space<vmem>>, vector<128x12xf32>
    %cst = arith.constant dense<0.000000e+00> : vector<8x12xf32>
    %2 = tpu.matmul %0, %1, %cst {dimension_numbers = #tpu.dot_dimension_numbers<[1], [0], [0], [1], [0, 0, 1, 1], [], []>} : vector<8x128xf32>, vector<128x12xf32>, vector<8x12xf32> -> vector<8x12xf32>
    %c0_3 = arith.constant 0 : index
    %c0_4 = arith.constant 0 : index
    %3 = vector.load %arg3[%c0_3, %c0_4] : memref<1x12xf32, #tpu.memory_space<vmem>>, vector<1x12xf32>
    %4 = vector.broadcast %3 : vector<1x12xf32> to vector<8x12xf32>
    %5 = arith.addf %2, %4 : vector<8x12xf32>
    %6 = arith.negf %5 : vector<8x12xf32>
    %7 = math.exp %6 : vector<8x12xf32>
    %cst_5 = arith.constant 1.000000e+00 : f32
    %8 = vector.broadcast %cst_5 : f32 to vector<8x12xf32>
    %9 = arith.addf %8, %7 : vector<8x12xf32>
    %10 = arith.divf %8, %9 : vector<8x12xf32>
    %cst_6 = arith.constant 0.899999976 : f32
    %11 = vector.broadcast %cst_6 : f32 to vector<8x12xf32>
    %12 = arith.mulf %11, %10 : vector<8x12xf32>
    %c0_7 = arith.constant 0 : index
    %c0_8 = arith.constant 0 : index
    %13 = vector.load %arg4[%c0_7, %c0_8] : memref<8x12xf32, #tpu.memory_space<vmem>>, vector<8x12xf32>
    tpu.vector_store %arg4[%c0_7, %c0_8], %12 {strides = array<i32>} : memref<8x12xf32, #tpu.memory_space<vmem>>, vector<8x12xf32>,
    return
  }
  func.func @transform_0(%arg0: i32) -> (i32, i32) {
    %c0_i32 = arith.constant 0 : i32
    %c0_i32_0 = arith.constant 0 : i32
    return %arg0, %c0_i32 : i32, i32
  }
  func.func @transform_1(%arg0: i32) -> (i32, i32) {
    %c0_i32 = arith.constant 0 : i32
    %c0_i32_0 = arith.constant 0 : i32
    %c0_i32_1 = arith.constant 0 : i32
    return %c0_i32, %c0_i32_0 : i32, i32
  }
  func.func @transform_2(%arg0: i32) -> (i32, i32) {
    %c0_i32 = arith.constant 0 : i32
    %c0_i32_0 = arith.constant 0 : i32
    %c0_i32_1 = arith.constant 0 : i32
    return %c0_i32, %c0_i32_0 : i32, i32
  }
  func.func @transform_3(%arg0: i32) -> (i32, i32) {
    %c0_i32 = arith.constant 0 : i32
    %c0_i32_0 = arith.constant 0 : i32
    return %arg0, %c0_i32 : i32, i32
  }
}

</mosaic_0001>

<llo_original>
// kernel: tpu_custom_call.1
$region0: #{tpu_custom_call.1}
  #allocation0 [shape = 'u32[]', space=smem, size = 0x4, offset = 0x4, fixed_abs, tag = 'smem constant byte address 0x4 - core index']
  #allocation1 [shape = 'u32[72,128]{1,0:T(1,128)}', space=vmem, size = 0x9000, scoped, tag = 'internal scratch']
  %s0 = inlined_call_operand.vmem [shape: f32[8,128], index: 0, kind: input, shape index: {}]
  %s1 = inlined_call_operand.vmem [shape: f32[128,12], index: 1, kind: input, shape index: {}]
  %s2 = inlined_call_operand.vmem [shape: f32[1,12], index: 2, kind: input, shape index: {}]
  %s3 = inlined_call_operand.hbm [shape: f32[8,12], index: 3, kind: output, shape index: {}]
  %s4 = sld [smem:[#allocation0]]
  $region22: #{tpu_custom_call.1} parent=0
    _
  %s6 = ssub.s32 1, %s4
  %s7 = scalar_select 0, %s6, %s4
  $region1: #{tpu_custom_call.1} parent=0
    #allocation2 [shape = 'u8[4096]{0}', space=vmem, size = 0x1000, scoped, tag = 'output window, operand 0, single buffered']
    #allocation3 [shape = 's32[1]{0}', space=sflag, size = 0x4, scoped, tag = 'scoped memory for tpu_custom_call.1']
    %8 = vsyncpa [#allocation3], 0
    // Predicated region
    $region2: #{tpu_custom_call.1} parent=1 // pred_check
      _
    $region3: #{tpu_custom_call.1} parent=1 // pred_check_branch
      %10 = sbr.rel (0) target = $region5
    $region4: #{tpu_custom_call.1} parent=1 // pred_region
      _
    $region5: #{tpu_custom_call.1} parent=1 // pred_fallthru
      _
    // Predicated region
    $region6: #{tpu_custom_call.1} parent=1 // pred_check
      _
    $region7: #{tpu_custom_call.1} parent=1 // pred_check_branch
      %12 = sbr.rel (0) target = $region9
    $region8: #{tpu_custom_call.1} parent=1 // pred_region
      _
    $region9: #{tpu_custom_call.1} parent=1 // pred_fallthru
      _
    // Predicated region
    $region10: #{tpu_custom_call.1} parent=1 // pred_check
      _
    $region11: #{tpu_custom_call.1} parent=1 // pred_check_branch
      %14 = sbr.rel (0) target = $region13
    $region12: #{tpu_custom_call.1} parent=1 // pred_region
      _
    $region13: #{tpu_custom_call.1} parent=1 // pred_fallthru
      _
    %v15 = vld [vmem:[%s0] sm:$0xff]
    %v16 = vld [vmem:[%s1] sm:$0xff]
    %v17 = vld [vmem:[%s1 + $0x8] sm:$0xff]
    %v18 = vld [vmem:[%s1 + $0x10] sm:$0xff]
    %v19 = vld [vmem:[%s1 + $0x18] sm:$0xff]
    %v20 = vld [vmem:[%s1 + $0x20] sm:$0xff]
    %v21 = vld [vmem:[%s1 + $0x28] sm:$0xff]
    %v22 = vld [vmem:[%s1 + $0x30] sm:$0xff]
    %v23 = vld [vmem:[%s1 + $0x38] sm:$0xff]
    %v24 = vld [vmem:[%s1 + $0x40] sm:$0xff]
    %v25 = vld [vmem:[%s1 + $0x48] sm:$0xff]
    %v26 = vld [vmem:[%s1 + $0x50] sm:$0xff]
    %v27 = vld [vmem:[%s1 + $0x58] sm:$0xff]
    %v28 = vld [vmem:[%s1 + $0x60] sm:$0xff]
    %v29 = vld [vmem:[%s1 + $0x68] sm:$0xff]
    %v30 = vld [vmem:[%s1 + $0x70] sm:$0xff]
    %v31 = vld [vmem:[%s1 + $0x78] sm:$0xff]
    %v32 = vld [vmem:[%s2] sm:$0x1]
    %v34 = vperm.slane %v32, 0
    %36 = vmatpush.msra.mxu0 %v31
    %37 = vmatpush.msra.mxu0 %v30
    %38 = vmatpush.msra.mxu0 %v29
    %39 = vmatpush.msra.mxu0 %v28
    %40 = vmatpush.msra.mxu0 %v27
    %41 = vmatpush.msra.mxu0 %v26
    %42 = vmatpush.msra.mxu0 %v25
    %43 = vmatpush.msra.mxu0 %v24
    %44 = vmatpush.msra.mxu0 %v23
    %45 = vmatpush.msra.mxu0 %v22
    %46 = vmatpush.msra.mxu0 %v21
    %47 = vmatpush.msra.mxu0 %v20
    %48 = vmatpush.msra.mxu0 %v19
    %49 = vmatpush.msra.mxu0 %v18
    %50 = vmatpush.msra.mxu0 %v17
    %51 = vmatpush.msra.mxu0 %v16
    %52 = vmatmul.f32.gmra.mxu0 %v15
    %v53 = vpop.f32.mrf.mxu0
    %v54 = vadd.f32 %v34, %v53
    %55 = vdwg.mxu0
    %v56 = vxor.u32 %v54, 2147483648
    %v57 = vmul.f32 %v56, 1.442695
    %v58 = vpow.pop %v57
    %v59 = vadd.f32 %v58, 1.0
    %v60 = vrcp.pop %v59
    %v61 = vmul.f32 %v59, %v60
    %v62 = vsub.f32 1.0, %v61
    %v63 = vmul.f32 %v60, %v62
    %v64 = vadd.f32 %v60, %v63
    %vm65 = vweird.f32 %v59
    %vm66 = vweird.f32 %v60
    %vm67 = vmor %vm65, %vm66
    %v68 = vsel %vm67, %v60, %v64
    %v69 = vand.u32 2147483647, %v59
    %vm70 = vcmp.eq.f32.partialorder %v69, 8.507059e+37
    %v71 = vand.u32 %v59, 2147483648
    %v72 = vor.u32 1.1754944e-38, %v71
    %v73 = vsel %vm70, %v72, %v68
    %v74 = vmul.f32 1.0, %v73
    %v75 = vmul.f32 %v74, 0.9
    %vm76 = vcmask 97280
    %77 = vst.msk [vmem:[#allocation2] sm:$0xff] %vm76, %v75
    // Predicated region
    $region14: #{tpu_custom_call.1} parent=1 // pred_check
      _
    $region15: #{tpu_custom_call.1} parent=1 // pred_check_branch
      %79 = sbr.rel (0) target = $region17
    $region16: #{tpu_custom_call.1} parent=1 // pred_region
      %81 = vsyncadd [#allocation3], 0
      %s83 = sshll.u32 [#allocation2], 4
      %s84 = int_to_ptr.vmem [resolvable:$true] %s83
      %s85 = sshll.u32 %s3, 4
      %s86 = int_to_ptr.hbm [resolvable:$true] %s85
      %88 = dma.vmem_to_hbm [thread:$0]  %s84, 128, %s86, [#allocation3]
    $region17: #{tpu_custom_call.1} parent=1 // pred_fallthru
      _
    // Predicated region
    $region18: #{tpu_custom_call.1} parent=1 // pred_check
      _
    $region19: #{tpu_custom_call.1} parent=1 // pred_check_branch
      %90 = sbr.rel (0) target = $region21
    $region20: #{tpu_custom_call.1} parent=1 // pred_region
      %92 = dma.done [#allocation3], 128
    $region21: #{tpu_custom_call.1} parent=1 // pred_fallthru
      _
    %93 = vsyncpa [#allocation3], 1

</llo_original>
